<compile_context>
chip_gen: v5e
topology: v5e:2x2
jax: 0.10.0
libtpu: 0.0.40
codegen_flags: <defaults>
</compile_context>

<pallas_src>
import numpy as np
import jax
import jax.numpy as jnp
from jax import lax
from jax.experimental import pallas as pl
from jax.experimental.pallas import tpu as pltpu

# ----------------- configuration (mirrors Autoencoder.__init__) -----------------
IMAGE_SIZE = 16
PARAMS = dict(kernel_size=2, stride=2, bottleneck_dim=1,
              mps_layers=2, n_block_wires=2, n_params_block=2, seed=0)

KERNEL_SIZE = PARAMS["kernel_size"]
STRIDE = PARAMS["stride"]
PADDING = 0                                             # Autoencoder forces padding = 0
WIRES = int(np.ceil(np.log2(KERNEL_SIZE * KERNEL_SIZE)))
BOTTLENECK = PARAMS["bottleneck_dim"]
DISCARDED = WIRES - BOTTLENECK
MPS_LAYERS = PARAMS["mps_layers"]
N_BLOCKS = WIRES - 1                                    # qml.MPS with n_block_wires == 2
D = 2 ** WIRES                                          # amplitude-embedding dimension
PPR = (IMAGE_SIZE + 2 * PADDING - KERNEL_SIZE) // STRIDE + 1
PATCH_NO = PPR * PPR
HW = IMAGE_SIZE * IMAGE_SIZE
KEEP = 2 ** BOTTLENECK                                  # kept amplitudes in swap test


# ----------------------------- parameter setup (host) ----------------------------
def _ry(theta):
    c, s = np.cos(theta / 2.0), np.sin(theta / 2.0)
    return np.array([[c, -s], [s, c]], dtype=np.float64)


_CNOT = np.array([[1, 0, 0, 0],
                  [0, 1, 0, 0],
                  [0, 0, 0, 1],
                  [0, 0, 1, 0]], dtype=np.float64)


def build_circuit_unitary(weights_mps):
    """Dense unitary of the MPS circuit on the data register."""
    U = np.eye(D, dtype=np.float64)
    for layer in range(MPS_LAYERS):
        for blk in range(N_BLOCKS):
            w0, w1 = float(weights_mps[layer, blk, 0]), float(weights_mps[layer, blk, 1])
            # MPS_BLOCK: RY(w0) on wire blk, RY(w1) on wire blk+1, CNOT(blk, blk+1)
            g2 = _CNOT @ np.kron(_ry(w0), _ry(w1))      # wire blk is the MSB (PennyLane)
            full = np.kron(np.kron(np.eye(2 ** blk), g2),
                           np.eye(2 ** (WIRES - blk - 2)))
            U = full @ U
    return U


def build_cover():
    """cover[p, h*w] / count — the overlap-add averaging operator."""
    cover = np.zeros((PATCH_NO, IMAGE_SIZE, IMAGE_SIZE), dtype=np.float32)
    for p in range(PATCH_NO):
        r0 = (p // PPR) * STRIDE
        c0 = (p % PPR) * STRIDE
        cover[p, r0:r0 + KERNEL_SIZE, c0:c0 + KERNEL_SIZE] = 1.0
    count = cover.sum(axis=0)
    return (cover / count[None]).reshape(PATCH_NO, HW)


def extract_patches(x):
    """im2col: (bs,1,H,W) -> (bs, PATCH_NO, D); patch order matches the torch loops."""
    bs = x.shape[0]
    img = x[:, 0]
    if STRIDE == KERNEL_SIZE and IMAGE_SIZE % KERNEL_SIZE == 0:
        # non-overlapping patches: one reshape + transpose (no 64-slice loop)
        p = img.reshape(bs, PPR, KERNEL_SIZE, PPR, KERNEL_SIZE)
        p = p.transpose(0, 1, 3, 2, 4).reshape(bs, PATCH_NO, KERNEL_SIZE * KERNEL_SIZE)
    else:
        cols = []
        for j in range(0, IMAGE_SIZE - KERNEL_SIZE + 1, STRIDE):
            for k in range(0, IMAGE_SIZE - KERNEL_SIZE + 1, STRIDE):
                cols.append(img[:, j:j + KERNEL_SIZE, k:k + KERNEL_SIZE].reshape(bs, -1))
        p = jnp.stack(cols, axis=1)
    pad = D - KERNEL_SIZE * KERNEL_SIZE
    if pad:
        p = jnp.pad(p, ((0, 0), (0, 0), (0, pad)))      # AmplitudeEmbedding pad_with=0
    return p.astype(jnp.float32)


# ---------------------------------- Pallas kernel ---------------------------------
def encoder_kernel(patch_ref, uk_ref, cover_ref, out_ref):
    """patch_ref: (D, bs, PATCH_NO)  VMEM — D amplitude planes, each (bs, PATCH_NO)
       uk_ref:    (KEEP, D)          SMEM — first KEEP rows of the circuit unitary
       cover_ref: (PATCH_NO, HW)     VMEM — count-normalized overlap-add operator
       out_ref:   (bs, HW)           VMEM
    """
    # AmplitudeEmbedding(normalize=True); all-zero patch -> state |0...0>
    p = [patch_ref[d] for d in range(D)]                # D x (bs, PATCH_NO)
    sq = p[0] * p[0]
    for d in range(1, D):
        sq = sq + p[d] * p[d]
    nonzero = sq > 0.0
    inv = jnp.where(nonzero, lax.rsqrt(jnp.where(nonzero, sq, 1.0)), 0.0)
    psi = [jnp.where(nonzero, p[d] * inv, 1.0 if d == 0 else 0.0) for d in range(D)]

    # MPS circuit + SWAP test vs |0..0> trash register:
    #   fid[b, p] = sum_{k < KEEP} ( sum_d U[k, d] * psi_d[b, p] )^2
    # KEEP=2, D=4 -> fully unrolled SMEM-scalar x vector FMAs on the VPU.
    fid = None
    for k in range(KEEP):
        row = uk_ref[k, 0] * psi[0]
        for d in range(1, D):
            row = row + uk_ref[k, d] * psi[d]
        term = row * row
        fid = term if fid is None else fid + term       # (bs, PATCH_NO)

    # overlap-add + divide-by-count as a single MXU matmul (lane-dense HW=256 output)
    out_ref[...] = jnp.dot(fid, cover_ref[...], preferred_element_type=jnp.float32)


def autoencoder_forward(x, uk, cover):
    bs = x.shape[0]
    patches = extract_patches(x)                        # (bs, PATCH_NO, D)
    planes = jnp.transpose(patches, (2, 0, 1))          # (D, bs, PATCH_NO)
    out = pl.pallas_call(
        encoder_kernel,
        out_shape=jax.ShapeDtypeStruct((bs, HW), jnp.float32),
        grid_spec=pltpu.PrefetchScalarGridSpec(
            num_scalar_prefetch=0,
            grid=(1,),                                  # whole batch in one invocation
            in_specs=[
                pl.BlockSpec((D, bs, PATCH_NO), lambda i: (0, 0, 0)),
                pl.BlockSpec(memory_space=pltpu.MemorySpace.SMEM),
                pl.BlockSpec((PATCH_NO, HW), lambda i: (0, 0)),
            ],
            out_specs=pl.BlockSpec((bs, HW), lambda i: (0, 0)),
        ),
        compiler_params=pltpu.CompilerParams(
            dimension_semantics=("arbitrary",)),
    )(planes, uk, cover)
    return out.reshape(bs, IMAGE_SIZE, IMAGE_SIZE)


# -------------------------------------- main ---------------------------------------
if __name__ == "__main__":
    assert PARAMS["n_params_block"] == 2 and PARAMS["n_block_wires"] == 2

    key = jax.random.PRNGKey(0)
    kx, kw = jax.random.split(key)
    x = jax.random.normal(kx, (2, 1, IMAGE_SIZE, IMAGE_SIZE), dtype=jnp.float32)

    # deterministic weights (normal init); torch RNG stream is not reproduced
    weights_mps = np.asarray(
        jax.random.normal(kw, (MPS_LAYERS, N_BLOCKS, PARAMS["n_params_block"])))

    U = build_circuit_unitary(weights_mps)
    uk = jnp.asarray(U[:KEEP, :], dtype=jnp.float32)    # (KEEP, D) rows that matter
    cover = jnp.asarray(build_cover())                  # (PATCH_NO, HW)

    fwd = jax.jit(autoencoder_forward)
    out = jax.block_until_ready(fwd(x, uk, cover))

    # pure-JAX reference for sanity
    patches = extract_patches(x)
    nrm = jnp.linalg.norm(patches, axis=-1, keepdims=True)
    e0 = jnp.zeros((D,), jnp.float32).at[0].set(1.0)
    psi = jnp.where(nrm > 0, patches / jnp.where(nrm > 0, nrm, 1.0), e0)
    psi2 = jnp.einsum("bpd,ed->bpe", psi, jnp.asarray(U, jnp.float32))
    fid = jnp.sum(psi2[..., :KEEP] ** 2, axis=-1)
    ref = jnp.einsum("bp,ph->bh", fid, cover).reshape(x.shape[0], IMAGE_SIZE, IMAGE_SIZE)
    assert jnp.allclose(out, ref, atol=1e-5, rtol=1e-5), float(jnp.max(jnp.abs(out - ref)))

    print("KERNEL_OK")
</pallas_src>

<mosaic_0001>
module attributes {stable_mosaic.version = 11 : i64} {
  func.func @encoder_kernel(%arg0: i32, %arg1: memref<4x2x64xf32, #tpu.memory_space<vmem>>, %arg2: memref<2x4xf32, #tpu.memory_space<smem>>, %arg3: memref<64x256xf32, #tpu.memory_space<vmem>>, %arg4: memref<2x256xf32, #tpu.memory_space<vmem>>) attributes {dimension_semantics = [#tpu.dimension_semantics<arbitrary>], iteration_bounds = array<i64: 1>, scalar_prefetch = 0 : i64, scratch_operands = 0 : i64, tpu.core_type = #tpu.core_type<tc>, window_params = [{pipeline_mode = #tpu.pipeline_mode<synchronous>, transform_indices = @transform_0, window_bounds = array<i64: 4, 2, 64>}, {transform_indices = @transform_1, window_bounds = array<i64: 2, 4>}, {pipeline_mode = #tpu.pipeline_mode<synchronous>, transform_indices = @transform_2, window_bounds = array<i64: 64, 256>}, {pipeline_mode = #tpu.pipeline_mode<synchronous>, transform_indices = @transform_3, window_bounds = array<i64: 2, 256>}]} {
    %c0 = arith.constant 0 : index
    %c0_0 = arith.constant 0 : index
    %c0_1 = arith.constant 0 : index
    %0 = vector.load %arg1[%c0, %c0_0, %c0_1] : memref<4x2x64xf32, #tpu.memory_space<vmem>>, vector<1x2x64xf32>
    %1 = vector.shape_cast %0 : vector<1x2x64xf32> to vector<2x64xf32>
    %c1 = arith.constant 1 : index
    %c0_2 = arith.constant 0 : index
    %c0_3 = arith.constant 0 : index
    %2 = vector.load %arg1[%c1, %c0_2, %c0_3] : memref<4x2x64xf32, #tpu.memory_space<vmem>>, vector<1x2x64xf32>
    %3 = vector.shape_cast %2 : vector<1x2x64xf32> to vector<2x64xf32>
    %c2 = arith.constant 2 : index
    %c0_4 = arith.constant 0 : index
    %c0_5 = arith.constant 0 : index
    %4 = vector.load %arg1[%c2, %c0_4, %c0_5] : memref<4x2x64xf32, #tpu.memory_space<vmem>>, vector<1x2x64xf32>
    %5 = vector.shape_cast %4 : vector<1x2x64xf32> to vector<2x64xf32>
    %c3 = arith.constant 3 : index
    %c0_6 = arith.constant 0 : index
    %c0_7 = arith.constant 0 : index
    %6 = vector.load %arg1[%c3, %c0_6, %c0_7] : memref<4x2x64xf32, #tpu.memory_space<vmem>>, vector<1x2x64xf32>
    %7 = vector.shape_cast %6 : vector<1x2x64xf32> to vector<2x64xf32>
    %8 = arith.mulf %1, %1 : vector<2x64xf32>
    %9 = arith.mulf %3, %3 : vector<2x64xf32>
    %10 = arith.addf %8, %9 : vector<2x64xf32>
    %11 = arith.mulf %5, %5 : vector<2x64xf32>
    %12 = arith.addf %10, %11 : vector<2x64xf32>
    %13 = arith.mulf %7, %7 : vector<2x64xf32>
    %14 = arith.addf %12, %13 : vector<2x64xf32>
    %cst = arith.constant 0.000000e+00 : f32
    %15 = vector.broadcast %cst : f32 to vector<2x64xf32>
    %16 = arith.cmpf ogt, %14, %15 : vector<2x64xf32>
    %cst_8 = arith.constant 1.000000e+00 : f32
    %17 = vector.broadcast %cst_8 : f32 to vector<2x64xf32>
    %18 = arith.select %16, %14, %17 : vector<2x64xi1>, vector<2x64xf32>
    %19 = math.rsqrt %18 : vector<2x64xf32>
    %cst_9 = arith.constant 0.000000e+00 : f32
    %20 = vector.broadcast %cst_9 : f32 to vector<2x64xf32>
    %21 = arith.select %16, %19, %20 : vector<2x64xi1>, vector<2x64xf32>
    %22 = arith.mulf %1, %21 : vector<2x64xf32>
    %cst_10 = arith.constant 1.000000e+00 : f32
    %23 = vector.broadcast %cst_10 : f32 to vector<2x64xf32>
    %24 = arith.select %16, %22, %23 : vector<2x64xi1>, vector<2x64xf32>
    %25 = arith.mulf %3, %21 : vector<2x64xf32>
    %cst_11 = arith.constant 0.000000e+00 : f32
    %26 = vector.broadcast %cst_11 : f32 to vector<2x64xf32>
    %27 = arith.select %16, %25, %26 : vector<2x64xi1>, vector<2x64xf32>
    %28 = arith.mulf %5, %21 : vector<2x64xf32>
    %cst_12 = arith.constant 0.000000e+00 : f32
    %29 = vector.broadcast %cst_12 : f32 to vector<2x64xf32>
    %30 = arith.select %16, %28, %29 : vector<2x64xi1>, vector<2x64xf32>
    %31 = arith.mulf %7, %21 : vector<2x64xf32>
    %cst_13 = arith.constant 0.000000e+00 : f32
    %32 = vector.broadcast %cst_13 : f32 to vector<2x64xf32>
    %33 = arith.select %16, %31, %32 : vector<2x64xi1>, vector<2x64xf32>
    %c0_14 = arith.constant 0 : index
    %c0_15 = arith.constant 0 : index
    %34 = memref.load %arg2[%c0_14, %c0_15] : memref<2x4xf32, #tpu.memory_space<smem>>
    %35 = vector.broadcast %34 : f32 to vector<2x64xf32>
    %36 = arith.mulf %35, %24 : vector<2x64xf32>
    %c0_16 = arith.constant 0 : index
    %c1_17 = arith.constant 1 : index
    %37 = memref.load %arg2[%c0_16, %c1_17] : memref<2x4xf32, #tpu.memory_space<smem>>
    %38 = vector.broadcast %37 : f32 to vector<2x64xf32>
    %39 = arith.mulf %38, %27 : vector<2x64xf32>
    %40 = arith.addf %36, %39 : vector<2x64xf32>
    %c0_18 = arith.constant 0 : index
    %c2_19 = arith.constant 2 : index
    %41 = memref.load %arg2[%c0_18, %c2_19] : memref<2x4xf32, #tpu.memory_space<smem>>
    %42 = vector.broadcast %41 : f32 to vector<2x64xf32>
    %43 = arith.mulf %42, %30 : vector<2x64xf32>
    %44 = arith.addf %40, %43 : vector<2x64xf32>
    %c0_20 = arith.constant 0 : index
    %c3_21 = arith.constant 3 : index
    %45 = memref.load %arg2[%c0_20, %c3_21] : memref<2x4xf32, #tpu.memory_space<smem>>
    %46 = vector.broadcast %45 : f32 to vector<2x64xf32>
    %47 = arith.mulf %46, %33 : vector<2x64xf32>
    %48 = arith.addf %44, %47 : vector<2x64xf32>
    %49 = arith.mulf %48, %48 : vector<2x64xf32>
    %c1_22 = arith.constant 1 : index
    %c0_23 = arith.constant 0 : index
    %50 = memref.load %arg2[%c1_22, %c0_23] : memref<2x4xf32, #tpu.memory_space<smem>>
    %51 = vector.broadcast %50 : f32 to vector<2x64xf32>
    %52 = arith.mulf %51, %24 : vector<2x64xf32>
    %c1_24 = arith.constant 1 : index
    %c1_25 = arith.constant 1 : index
    %53 = memref.load %arg2[%c1_24, %c1_25] : memref<2x4xf32, #tpu.memory_space<smem>>
    %54 = vector.broadcast %53 : f32 to vector<2x64xf32>
    %55 = arith.mulf %54, %27 : vector<2x64xf32>
    %56 = arith.addf %52, %55 : vector<2x64xf32>
    %c1_26 = arith.constant 1 : index
    %c2_27 = arith.constant 2 : index
    %57 = memref.load %arg2[%c1_26, %c2_27] : memref<2x4xf32, #tpu.memory_space<smem>>
    %58 = vector.broadcast %57 : f32 to vector<2x64xf32>
    %59 = arith.mulf %58, %30 : vector<2x64xf32>
    %60 = arith.addf %56, %59 : vector<2x64xf32>
    %c1_28 = arith.constant 1 : index
    %c3_29 = arith.constant 3 : index
    %61 = memref.load %arg2[%c1_28, %c3_29] : memref<2x4xf32, #tpu.memory_space<smem>>
    %62 = vector.broadcast %61 : f32 to vector<2x64xf32>
    %63 = arith.mulf %62, %33 : vector<2x64xf32>
    %64 = arith.addf %60, %63 : vector<2x64xf32>
    %65 = arith.mulf %64, %64 : vector<2x64xf32>
    %66 = arith.addf %49, %65 : vector<2x64xf32>
    %c0_30 = arith.constant 0 : index
    %c0_31 = arith.constant 0 : index
    %67 = vector.load %arg3[%c0_30, %c0_31] : memref<64x256xf32, #tpu.memory_space<vmem>>, vector<64x256xf32>
    %cst_32 = arith.constant dense<0.000000e+00> : vector<2x256xf32>
    %68 = tpu.matmul %66, %67, %cst_32 {dimension_numbers = #tpu.dot_dimension_numbers<[1], [0], [0], [1], [0, 0, 1, 1], [], []>} : vector<2x64xf32>, vector<64x256xf32>, vector<2x256xf32> -> vector<2x256xf32>
    %c0_33 = arith.constant 0 : index
    %c0_34 = arith.constant 0 : index
    %69 = vector.load %arg4[%c0_33, %c0_34] : memref<2x256xf32, #tpu.memory_space<vmem>>, vector<2x256xf32>
    tpu.vector_store %arg4[%c0_33, %c0_34], %68 {strides = array<i32>} : memref<2x256xf32, #tpu.memory_space<vmem>>, vector<2x256xf32>,
    return
  }
  func.func @transform_0(%arg0: i32) -> (i32, i32, i32) {
    %c0_i32 = arith.constant 0 : i32
    %c0_i32_0 = arith.constant 0 : i32
    %c0_i32_1 = arith.constant 0 : i32
    %c0_i32_2 = arith.constant 0 : i32
    return %c0_i32, %c0_i32_0, %c0_i32_1 : i32, i32, i32
  }
  func.func @transform_1(%arg0: i32) -> (i32, i32) {
    %c0_i32 = arith.constant 0 : i32
    %c0_i32_0 = arith.constant 0 : i32
    %c0_i32_1 = arith.constant 0 : i32
    return %c0_i32, %c0_i32_0 : i32, i32
  }
  func.func @transform_2(%arg0: i32) -> (i32, i32) {
    %c0_i32 = arith.constant 0 : i32
    %c0_i32_0 = arith.constant 0 : i32
    %c0_i32_1 = arith.constant 0 : i32
    return %c0_i32, %c0_i32_0 : i32, i32
  }
  func.func @transform_3(%arg0: i32) -> (i32, i32) {
    %c0_i32 = arith.constant 0 : i32
    %c0_i32_0 = arith.constant 0 : i32
    %c0_i32_1 = arith.constant 0 : i32
    return %c0_i32, %c0_i32_0 : i32, i32
  }
}

</mosaic_0001>

<llo_original>
// kernel: squeeze.1
$region0: #{squeeze.1}
  %s0 = inlined_call_operand.hbm [shape: f32[2,1,16,16], index: 0, kind: input, shape index: {}]
  %s1 = inlined_call_operand.vmem [shape: f32[2,8,2,8,2], index: 1, kind: output, shape index: {}]
  $region1: #{squeeze.1} parent=0
    #allocation0 [shape = 'u8[16384]{0}', space=vmem, size = 0x4000, scoped, tag = 'operand span for operand 0']
    #allocation1 [shape = 's32[1]{0}', space=sflag, size = 0x4, scoped, tag = 'scoped memory for squeeze.1']
    %2 = vsyncpa [#allocation1], 0
    %4 = vsyncadd [#allocation1], 0
    %s6 = sshll.u32 %s0, 4
    %s7 = int_to_ptr.hbm [resolvable:$true] %s6
    %s8 = sshll.u32 [#allocation0], 4
    %s9 = int_to_ptr.vmem [resolvable:$true] %s8
    %11 = dma.hbm_to_vmem [thread:$0]  %s7, 512, %s9, [#allocation1]
    %13 = dma.done [#allocation1], 512
    %v14 = vld [vmem:[#allocation0] sm:$0xff]
    %vm15 = vcmask 15360
    %16 = vst.msk [vmem:[%s1] ss:$8 sm:$0xf] %vm15, %v14
    %17 = vst.msk [vmem:[%s1] ss:$8 sm:$0xf0] %vm15, %v14
    %s18 = scalar_lea.vmem [#allocation0], 8
    %v19 = vld [vmem:[%s18] sm:$0xff]
    %vm20 = vcmask 15360
    %s21 = scalar_lea.vmem %s1, 64
    %22 = vst.msk [vmem:[%s21] ss:$8 sm:$0xf] %vm20, %v19
    %s23 = scalar_lea.vmem %s1, 64
    %24 = vst.msk [vmem:[%s23] ss:$8 sm:$0xf0] %vm20, %v19
    %s25 = scalar_lea.vmem [#allocation0], 16
    %v26 = vld [vmem:[%s25] sm:$0xff]
    %vm27 = vcmask 15360
    %s28 = scalar_lea.vmem %s1, 128
    %29 = vst.msk [vmem:[%s28] ss:$8 sm:$0xf] %vm27, %v26
    %s30 = scalar_lea.vmem %s1, 128
    %31 = vst.msk [vmem:[%s30] ss:$8 sm:$0xf0] %vm27, %v26
    %s32 = scalar_lea.vmem [#allocation0], 24
    %v33 = vld [vmem:[%s32] sm:$0xff]
    %vm34 = vcmask 15360
    %s35 = scalar_lea.vmem %s1, 192
    %36 = vst.msk [vmem:[%s35] ss:$8 sm:$0xf] %vm34, %v33
    %s37 = scalar_lea.vmem %s1, 192
    %38 = vst.msk [vmem:[%s37] ss:$8 sm:$0xf0] %vm34, %v33
    %v39 = vld [vmem:[#allocation0] sm:$0xff]
    %40 = vrot.lane.b32.xlu0 %v39, 126
    %v41 = vpop.permute.xlu0 %40
    %vm42 = vcmask 15360
    %s43 = scalar_lea.vmem %s1, 1
    %44 = vst.msk [vmem:[%s43] ss:$8 sm:$0xf] %vm42, %v41
    %s45 = scalar_lea.vmem %s1, 1
    %46 = vst.msk [vmem:[%s45] ss:$8 sm:$0xf0] %vm42, %v41
    %s47 = scalar_lea.vmem [#allocation0], 8
    %v48 = vld [vmem:[%s47] sm:$0xff]
    %49 = vrot.lane.b32.xlu0 %v48, 126
    %v50 = vpop.permute.xlu0 %49
    %vm51 = vcmask 15360
    %s52 = scalar_lea.vmem %s1, 65
    %53 = vst.msk [vmem:[%s52] ss:$8 sm:$0xf] %vm51, %v50
    %s54 = scalar_lea.vmem %s1, 65
    %55 = vst.msk [vmem:[%s54] ss:$8 sm:$0xf0] %vm51, %v50
    %s56 = scalar_lea.vmem [#allocation0], 16
    %v57 = vld [vmem:[%s56] sm:$0xff]
    %58 = vrot.lane.b32.xlu0 %v57, 126
    %v59 = vpop.permute.xlu0 %58
    %vm60 = vcmask 15360
    %s61 = scalar_lea.vmem %s1, 129
    %62 = vst.msk [vmem:[%s61] ss:$8 sm:$0xf] %vm60, %v59
    %s63 = scalar_lea.vmem %s1, 129
    %64 = vst.msk [vmem:[%s63] ss:$8 sm:$0xf0] %vm60, %v59
    %s65 = scalar_lea.vmem [#allocation0], 24
    %v66 = vld [vmem:[%s65] sm:$0xff]
    %67 = vrot.lane.b32.xlu0 %v66, 126
    %v68 = vpop.permute.xlu0 %67
    %vm69 = vcmask 15360
    %s70 = scalar_lea.vmem %s1, 193
    %71 = vst.msk [vmem:[%s70] ss:$8 sm:$0xf] %vm69, %v68
    %s72 = scalar_lea.vmem %s1, 193
    %73 = vst.msk [vmem:[%s72] ss:$8 sm:$0xf0] %vm69, %v68
    %v74 = vld [vmem:[#allocation0] sm:$0xff]
    %75 = vrot.lane.b32.xlu0 %v74, 124
    %v76 = vpop.permute.xlu0 %75
    %vm77 = vcmask 15360
    %s78 = scalar_lea.vmem %s1, 2
    %79 = vst.msk [vmem:[%s78] ss:$8 sm:$0xf] %vm77, %v76
    %s80 = scalar_lea.vmem %s1, 2
    %81 = vst.msk [vmem:[%s80] ss:$8 sm:$0xf0] %vm77, %v76
    %s82 = scalar_lea.vmem [#allocation0], 8
    %v83 = vld [vmem:[%s82] sm:$0xff]
    %84 = vrot.lane.b32.xlu0 %v83, 124
    %v85 = vpop.permute.xlu0 %84
    %vm86 = vcmask 15360
    %s87 = scalar_lea.vmem %s1, 66
    %88 = vst.msk [vmem:[%s87] ss:$8 sm:$0xf] %vm86, %v85
    %s89 = scalar_lea.vmem %s1, 66
    %90 = vst.msk [vmem:[%s89] ss:$8 sm:$0xf0] %vm86, %v85
    %s91 = scalar_lea.vmem [#allocation0], 16
    %v92 = vld [vmem:[%s91] sm:$0xff]
    %93 = vrot.lane.b32.xlu0 %v92, 124
    %v94 = vpop.permute.xlu0 %93
    %vm95 = vcmask 15360
    %s96 = scalar_lea.vmem %s1, 130
    %97 = vst.msk [vmem:[%s96] ss:$8 sm:$0xf] %vm95, %v94
    %s98 = scalar_lea.vmem %s1, 130
    %99 = vst.msk [vmem:[%s98] ss:$8 sm:$0xf0] %vm95, %v94
    %s100 = scalar_lea.vmem [#allocation0], 24
    %v101 = vld [vmem:[%s100] sm:$0xff]
    %102 = vrot.lane.b32.xlu0 %v101, 124
    %v103 = vpop.permute.xlu0 %102
    %vm104 = vcmask 15360
    %s105 = scalar_lea.vmem %s1, 194
    %106 = vst.msk [vmem:[%s105] ss:$8 sm:$0xf] %vm104, %v103
    %s107 = scalar_lea.vmem %s1, 194
    %108 = vst.msk [vmem:[%s107] ss:$8 sm:$0xf0] %vm104, %v103
    %v109 = vld [vmem:[#allocation0] sm:$0xff]
    %110 = vrot.lane.b32.xlu0 %v109, 122
    %v111 = vpop.permute.xlu0 %110
    %vm112 = vcmask 15360
    %s113 = scalar_lea.vmem %s1, 3
    %114 = vst.msk [vmem:[%s113] ss:$8 sm:$0xf] %vm112, %v111
    %s115 = scalar_lea.vmem %s1, 3
    %116 = vst.msk [vmem:[%s115] ss:$8 sm:$0xf0] %vm112, %v111
    %s117 = scalar_lea.vmem [#allocation0], 8
    %v118 = vld [vmem:[%s117] sm:$0xff]
    %119 = vrot.lane.b32.xlu0 %v118, 122
    %v120 = vpop.permute.xlu0 %119
    %vm121 = vcmask 15360
    %s122 = scalar_lea.vmem %s1, 67
    %123 = vst.msk [vmem:[%s122] ss:$8 sm:$0xf] %vm121, %v120
    %s124 = scalar_lea.vmem %s1, 67
    %125 = vst.msk [vmem:[%s124] ss:$8 sm:$0xf0] %vm121, %v120
    %s126 = scalar_lea.vmem [#allocation0], 16
    %v127 = vld [vmem:[%s126] sm:$0xff]
    %128 = vrot.lane.b32.xlu0 %v127, 122
    %v129 = vpop.permute.xlu0 %128
    %vm130 = vcmask 15360
    %s131 = scalar_lea.vmem %s1, 131
    %132 = vst.msk [vmem:[%s131] ss:$8 sm:$0xf] %vm130, %v129
    %s133 = scalar_lea.vmem %s1, 131
    %134 = vst.msk [vmem:[%s133] ss:$8 sm:$0xf0] %vm130, %v129
    %s135 = scalar_lea.vmem [#allocation0], 24
    %v136 = vld [vmem:[%s135] sm:$0xff]
    %137 = vrot.lane.b32.xlu0 %v136, 122
    %v138 = vpop.permute.xlu0 %137
    %vm139 = vcmask 15360
    %s140 = scalar_lea.vmem %s1, 195
    %141 = vst.msk [vmem:[%s140] ss:$8 sm:$0xf] %vm139, %v138
    %s142 = scalar_lea.vmem %s1, 195
    %143 = vst.msk [vmem:[%s142] ss:$8 sm:$0xf0] %vm139, %v138
    %v144 = vld [vmem:[#allocation0] sm:$0xff]
    %145 = vrot.lane.b32.xlu0 %v144, 120
    %v146 = vpop.permute.xlu0 %145
    %vm147 = vcmask 15360
    %s148 = scalar_lea.vmem %s1, 4
    %149 = vst.msk [vmem:[%s148] ss:$8 sm:$0xf] %vm147, %v146
    %s150 = scalar_lea.vmem %s1, 4
    %151 = vst.msk [vmem:[%s150] ss:$8 sm:$0xf0] %vm147, %v146
    %s152 = scalar_lea.vmem [#allocation0], 8
    %v153 = vld [vmem:[%s152] sm:$0xff]
    %154 = vrot.lane.b32.xlu0 %v153, 120
    %v155 = vpop.permute.xlu0 %154
    %vm156 = vcmask 15360
    %s157 = scalar_lea.vmem %s1, 68
    %158 = vst.msk [vmem:[%s157] ss:$8 sm:$0xf] %vm156, %v155
    %s159 = scalar_lea.vmem %s1, 68
    %160 = vst.msk [vmem:[%s159] ss:$8 sm:$0xf0] %vm156, %v155
    %s161 = scalar_lea.vmem [#allocation0], 16
    %v162 = vld [vmem:[%s161] sm:$0xff]
    %163 = vrot.lane.b32.xlu0 %v162, 120
    %v164 = vpop.permute.xlu0 %163
    %vm165 = vcmask 15360
    %s166 = scalar_lea.vmem %s1, 132
    %167 = vst.msk [vmem:[%s166] ss:$8 sm:$0xf] %vm165, %v164
    %s168 = scalar_lea.vmem %s1, 132
    %169 = vst.msk [vmem:[%s168] ss:$8 sm:$0xf0] %vm165, %v164
    %s170 = scalar_lea.vmem [#allocation0], 24
    %v171 = vld [vmem:[%s170] sm:$0xff]
    %172 = vrot.lane.b32.xlu0 %v171, 120
    %v173 = vpop.permute.xlu0 %172
    %vm174 = vcmask 15360
    %s175 = scalar_lea.vmem %s1, 196
    %176 = vst.msk [vmem:[%s175] ss:$8 sm:$0xf] %vm174, %v173
    %s177 = scalar_lea.vmem %s1, 196
    %178 = vst.msk [vmem:[%s177] ss:$8 sm:$0xf0] %vm174, %v173
    %v179 = vld [vmem:[#allocation0] sm:$0xff]
    %180 = vrot.lane.b32.xlu0 %v179, 118
    %v181 = vpop.permute.xlu0 %180
    %vm182 = vcmask 15360
    %s183 = scalar_lea.vmem %s1, 5
    %184 = vst.msk [vmem:[%s183] ss:$8 sm:$0xf] %vm182, %v181
    %s185 = scalar_lea.vmem %s1, 5
    %186 = vst.msk [vmem:[%s185] ss:$8 sm:$0xf0] %vm182, %v181
    %s187 = scalar_lea.vmem [#allocation0], 8
    %v188 = vld [vmem:[%s187] sm:$0xff]
    %189 = vrot.lane.b32.xlu0 %v188, 118
    %v190 = vpop.permute.xlu0 %189
    %vm191 = vcmask 15360
    %s192 = scalar_lea.vmem %s1, 69
    %193 = vst.msk [vmem:[%s192] ss:$8 sm:$0xf] %vm191, %v190
    %s194 = scalar_lea.vmem %s1, 69
    %195 = vst.msk [vmem:[%s194] ss:$8 sm:$0xf0] %vm191, %v190
    %s196 = scalar_lea.vmem [#allocation0], 16
    %v197 = vld [vmem:[%s196] sm:$0xff]
    %198 = vrot.lane.b32.xlu0 %v197, 118
    %v199 = vpop.permute.xlu0 %198
    %vm200 = vcmask 15360
    %s201 = scalar_lea.vmem %s1, 133
    %202 = vst.msk [vmem:[%s201] ss:$8 sm:$0xf] %vm200, %v199
    %s203 = scalar_lea.vmem %s1, 133
    %204 = vst.msk [vmem:[%s203] ss:$8 sm:$0xf0] %vm200, %v199
    %s205 = scalar_lea.vmem [#allocation0], 24
    %v206 = vld [vmem:[%s205] sm:$0xff]
    %207 = vrot.lane.b32.xlu0 %v206, 118
    %v208 = vpop.permute.xlu0 %207
    %vm209 = vcmask 15360
    %s210 = scalar_lea.vmem %s1, 197
    %211 = vst.msk [vmem:[%s210] ss:$8 sm:$0xf] %vm209, %v208
    %s212 = scalar_lea.vmem %s1, 197
    %213 = vst.msk [vmem:[%s212] ss:$8 sm:$0xf0] %vm209, %v208
    %v214 = vld [vmem:[#allocation0] sm:$0xff]
    %215 = vrot.lane.b32.xlu0 %v214, 116
    %v216 = vpop.permute.xlu0 %215
    %vm217 = vcmask 15360
    %s218 = scalar_lea.vmem %s1, 6
    %219 = vst.msk [vmem:[%s218] ss:$8 sm:$0xf] %vm217, %v216
    %s220 = scalar_lea.vmem %s1, 6
    %221 = vst.msk [vmem:[%s220] ss:$8 sm:$0xf0] %vm217, %v216
    %s222 = scalar_lea.vmem [#allocation0], 8
    %v223 = vld [vmem:[%s222] sm:$0xff]
    %224 = vrot.lane.b32.xlu0 %v223, 116
    %v225 = vpop.permute.xlu0 %224
    %vm226 = vcmask 15360
    %s227 = scalar_lea.vmem %s1, 70
    %228 = vst.msk [vmem:[%s227] ss:$8 sm:$0xf] %vm226, %v225
    %s229 = scalar_lea.vmem %s1, 70
    %230 = vst.msk [vmem:[%s229] ss:$8 sm:$0xf0] %vm226, %v225
    %s231 = scalar_lea.vmem [#allocation0], 16
    %v232 = vld [vmem:[%s231] sm:$0xff]
    %233 = vrot.lane.b32.xlu0 %v232, 116
    %v234 = vpop.permute.xlu0 %233
    %vm235 = vcmask 15360
    %s236 = scalar_lea.vmem %s1, 134
    %237 = vst.msk [vmem:[%s236] ss:$8 sm:$0xf] %vm235, %v234
    %s238 = scalar_lea.vmem %s1, 134
    %239 = vst.msk [vmem:[%s238] ss:$8 sm:$0xf0] %vm235, %v234
    %s240 = scalar_lea.vmem [#allocation0], 24
    %v241 = vld [vmem:[%s240] sm:$0xff]
    %242 = vrot.lane.b32.xlu0 %v241, 116
    %v243 = vpop.permute.xlu0 %242
    %vm244 = vcmask 15360
    %s245 = scalar_lea.vmem %s1, 198
    %246 = vst.msk [vmem:[%s245] ss:$8 sm:$0xf] %vm244, %v243
    %s247 = scalar_lea.vmem %s1, 198
    %248 = vst.msk [vmem:[%s247] ss:$8 sm:$0xf0] %vm244, %v243
    %v249 = vld [vmem:[#allocation0] sm:$0xff]
    %250 = vrot.lane.b32.xlu0 %v249, 114
    %v251 = vpop.permute.xlu0 %250
    %vm252 = vcmask 15360
    %s253 = scalar_lea.vmem %s1, 7
    %254 = vst.msk [vmem:[%s253] ss:$8 sm:$0xf] %vm252, %v251
    %s255 = scalar_lea.vmem %s1, 7
    %256 = vst.msk [vmem:[%s255] ss:$8 sm:$0xf0] %vm252, %v251
    %s257 = scalar_lea.vmem [#allocation0], 8
    %v258 = vld [vmem:[%s257] sm:$0xff]
    %259 = vrot.lane.b32.xlu0 %v258, 114
    %v260 = vpop.permute.xlu0 %259
    %vm261 = vcmask 15360
    %s262 = scalar_lea.vmem %s1, 71
    %263 = vst.msk [vmem:[%s262] ss:$8 sm:$0xf] %vm261, %v260
    %s264 = scalar_lea.vmem %s1, 71
    %265 = vst.msk [vmem:[%s264] ss:$8 sm:$0xf0] %vm261, %v260
    %s266 = scalar_lea.vmem [#allocation0], 16
    %v267 = vld [vmem:[%s266] sm:$0xff]
    %268 = vrot.lane.b32.xlu0 %v267, 114
    %v269 = vpop.permute.xlu0 %268
    %vm270 = vcmask 15360
    %s271 = scalar_lea.vmem %s1, 135
    %272 = vst.msk [vmem:[%s271] ss:$8 sm:$0xf] %vm270, %v269
    %s273 = scalar_lea.vmem %s1, 135
    %274 = vst.msk [vmem:[%s273] ss:$8 sm:$0xf0] %vm270, %v269
    %s275 = scalar_lea.vmem [#allocation0], 24
    %v276 = vld [vmem:[%s275] sm:$0xff]
    %277 = vrot.lane.b32.xlu0 %v276, 114
    %v278 = vpop.permute.xlu0 %277
    %vm279 = vcmask 15360
    %s280 = scalar_lea.vmem %s1, 199
    %281 = vst.msk [vmem:[%s280] ss:$8 sm:$0xf] %vm279, %v278
    %s282 = scalar_lea.vmem %s1, 199
    %283 = vst.msk [vmem:[%s282] ss:$8 sm:$0xf0] %vm279, %v278
    %284 = vsyncpa [#allocation1], 1

// kernel: autoencoder_forward.1
$region0: #{autoencoder_forward.1}
  #allocation0 [shape = 'u32[]', space=smem, size = 0x4, offset = 0x4, fixed_abs, tag = 'smem constant byte address 0x4 - core index']
  #allocation1 [shape = 'u32[72,128]{1,0:T(1,128)}', space=vmem, size = 0x9000, scoped, tag = 'internal scratch']
  %s0 = inlined_call_operand.vmem [shape: f32[4,2,64], index: 0, kind: input, shape index: {}]
  %s1 = inlined_call_operand.vmem [shape: f32[2,4], index: 1, kind: input, shape index: {}]
  %s2 = inlined_call_operand.vmem [shape: f32[64,256], index: 2, kind: input, shape index: {}]
  %s3 = inlined_call_operand.vmem [shape: f32[2,256], index: 3, kind: output, shape index: {}]
  %s4 = sld [smem:[#allocation0]]
  $region26: #{autoencoder_forward.1} parent=0
    _
  %s6 = ssub.s32 1, %s4
  %s7 = scalar_select 0, %s6, %s4
  $region1: #{autoencoder_forward.1} parent=0
    #allocation2 [shape = 'u8[1024]{0}', space=smem, size = 0x400, scoped, tag = 'input window, operand 1, single buffered']
    #allocation3 [shape = 's32[1]{0}', space=sflag, size = 0x4, scoped, tag = 'scoped memory for autoencoder_forward.1']
    %8 = vsyncpa [#allocation3], 0
    // Predicated region
    $region2: #{autoencoder_forward.1} parent=1 // pred_check
      _
    $region3: #{autoencoder_forward.1} parent=1 // pred_check_branch
      %10 = sbr.rel (0) target = $region5
    $region4: #{autoencoder_forward.1} parent=1 // pred_region
      _
    $region5: #{autoencoder_forward.1} parent=1 // pred_fallthru
      _
    // Predicated region
    $region6: #{autoencoder_forward.1} parent=1 // pred_check
      _
    $region7: #{autoencoder_forward.1} parent=1 // pred_check_branch
      %12 = sbr.rel (0) target = $region9
    $region8: #{autoencoder_forward.1} parent=1 // pred_region
      %14 = vsyncadd [#allocation3], 0
      %s16 = sshll.u32 %s1, 4
      %s17 = int_to_ptr.vmem [resolvable:$true] %s16
      %19 = dma.vmem_to_smem %s17, 32, [#allocation2], [#allocation3]
    $region9: #{autoencoder_forward.1} parent=1 // pred_fallthru
      _
    // Predicated region
    $region10: #{autoencoder_forward.1} parent=1 // pred_check
      _
    $region11: #{autoencoder_forward.1} parent=1 // pred_check_branch
      %21 = sbr.rel (0) target = $region13
    $region12: #{autoencoder_forward.1} parent=1 // pred_region
      _
    $region13: #{autoencoder_forward.1} parent=1 // pred_fallthru
      _
    // Predicated region
    $region14: #{autoencoder_forward.1} parent=1 // pred_check
      _
    $region15: #{autoencoder_forward.1} parent=1 // pred_check_branch
      %23 = sbr.rel (0) target = $region17
    $region16: #{autoencoder_forward.1} parent=1 // pred_region
      %25 = dma.done [#allocation3], 32
    $region17: #{autoencoder_forward.1} parent=1 // pred_fallthru
      _
    %26 = sfence
    %v27 = vld [vmem:[%s0] sm:$0x3]
    %s28 = scalar_lea.vmem %s0, 2
    %v29 = vld [vmem:[%s28] sm:$0x3]
    %s30 = scalar_lea.vmem %s0, 4
    %v31 = vld [vmem:[%s30] sm:$0x3]
    %s32 = scalar_lea.vmem %s0, 6
    %v33 = vld [vmem:[%s32] sm:$0x3]
    %v34 = vmul.f32 %v27, %v27
    %v35 = vmul.f32 %v29, %v29
    %v36 = vadd.f32 %v34, %v35
    %v37 = vmul.f32 %v31, %v31
    %v38 = vadd.f32 %v36, %v37
    %v39 = vmul.f32 %v33, %v33
    %v40 = vadd.f32 %v38, %v39
    %vm41 = vcmp.gt.f32.partialorder %v40, 0.0
    %v42 = vsel %vm41, %v40, 1.0
    %v43 = vrsqrt.pop %v42
    %v44 = vmul.f32 %v43, %v42
    %v45 = vmul.f32 %v44, %v43
    %v46 = vmul.f32 0.5, %v45
    %v47 = vsub.f32 1.5, %v46
    %v48 = vmul.f32 %v43, %v47
    %vm49 = vweird.f32 %v42
    %vm50 = vweird.f32 %v43
    %vm51 = vmor %vm49, %vm50
    %v52 = vsel %vm51, %v43, %v48
    %v53 = vsel %vm41, %v52, 0.0
    %v54 = vmul.f32 %v27, %v53
    %v55 = vsel %vm41, %v54, 1.0
    %v56 = vmul.f32 %v29, %v53
    %v57 = vsel %vm41, %v56, 0.0
    %v58 = vmul.f32 %v31, %v53
    %v59 = vsel %vm41, %v58, 0.0
    %v60 = vmul.f32 %v33, %v53
    %v61 = vsel %vm41, %v60, 0.0
    %s62 = sld [smem:[#allocation2]]
    %v63 = vstv %s62
    %v64 = vmul.f32 %v63, %v55
    %s65 = sld [smem:[#allocation2 + $0x1]]
    %v66 = vstv %s65
    %v67 = vmul.f32 %v66, %v57
    %v68 = vadd.f32 %v64, %v67
    %s69 = sld [smem:[#allocation2 + $0x2]]
    %v70 = vstv %s69
    %v71 = vmul.f32 %v70, %v59
    %v72 = vadd.f32 %v68, %v71
    %s73 = sld [smem:[#allocation2 + $0x3]]
    %v74 = vstv %s73
    %v75 = vmul.f32 %v74, %v61
    %v76 = vadd.f32 %v72, %v75
    %v77 = vmul.f32 %v76, %v76
    %s78 = sld [smem:[#allocation2 + $0x80]]
    %v79 = vstv %s78
    %v80 = vmul.f32 %v79, %v55
    %s81 = sld [smem:[#allocation2 + $0x81]]
    %v82 = vstv %s81
    %v83 = vmul.f32 %v82, %v57
    %v84 = vadd.f32 %v80, %v83
    %s85 = sld [smem:[#allocation2 + $0x82]]
    %v86 = vstv %s85
    %v87 = vmul.f32 %v86, %v59
    %v88 = vadd.f32 %v84, %v87
    %s89 = sld [smem:[#allocation2 + $0x83]]
    %v90 = vstv %s89
    %v91 = vmul.f32 %v90, %v61
    %v92 = vadd.f32 %v88, %v91
    %v93 = vmul.f32 %v92, %v92
    %v94 = vadd.f32 %v77, %v93
    %v95 = vld [vmem:[%s2] sm:$0xff]
    %v96 = vld [vmem:[%s2 + $0x8] sm:$0xff]
    %v97 = vld [vmem:[%s2 + $0x10] sm:$0xff]
    %v98 = vld [vmem:[%s2 + $0x18] sm:$0xff]
    %v99 = vld [vmem:[%s2 + $0x20] sm:$0xff]
    %v100 = vld [vmem:[%s2 + $0x28] sm:$0xff]
    %v101 = vld [vmem:[%s2 + $0x30] sm:$0xff]
    %v102 = vld [vmem:[%s2 + $0x38] sm:$0xff]
    %v103 = vld [vmem:[%s2 + $0x40] sm:$0xff]
    %v104 = vld [vmem:[%s2 + $0x48] sm:$0xff]
    %v105 = vld [vmem:[%s2 + $0x50] sm:$0xff]
    %v106 = vld [vmem:[%s2 + $0x58] sm:$0xff]
    %v107 = vld [vmem:[%s2 + $0x60] sm:$0xff]
    %v108 = vld [vmem:[%s2 + $0x68] sm:$0xff]
    %v109 = vld [vmem:[%s2 + $0x70] sm:$0xff]
    %v110 = vld [vmem:[%s2 + $0x78] sm:$0xff]
    %vm111 = vcmask 523264
    %v113 = vsel %vm111, %v94, 0
    %115 = vmatpush.msra.mxu0 0.0
    %116 = vmatpush.msra.mxu0 0.0
    %117 = vmatpush.msra.mxu0 0.0
    %118 = vmatpush.msra.mxu0 0.0
    %119 = vmatpush.msra.mxu0 0.0
    %120 = vmatpush.msra.mxu0 0.0
    %121 = vmatpush.msra.mxu0 0.0
    %122 = vmatpush.msra.mxu0 0.0
    %123 = vmatpush.msra.mxu0 %v109
    %124 = vmatpush.msra.mxu0 %v107
    %125 = vmatpush.msra.mxu0 %v105
    %126 = vmatpush.msra.mxu0 %v103
    %127 = vmatpush.msra.mxu0 %v101
    %128 = vmatpush.msra.mxu0 %v99
    %129 = vmatpush.msra.mxu0 %v97
    %130 = vmatpush.msra.mxu0 %v95
    %131 = vmatmul.f32.gmra.mxu0 %v113
    %v132 = vpop.f32.mrf.mxu0
    %v133 = vadd.f32 0.0, %v132
    %134 = vdwg.mxu0
    %135 = vmatpush.msra.mxu0 0.0
    %136 = vmatpush.msra.mxu0 0.0
    %137 = vmatpush.msra.mxu0 0.0
    %138 = vmatpush.msra.mxu0 0.0
    %139 = vmatpush.msra.mxu0 0.0
    %140 = vmatpush.msra.mxu0 0.0
    %141 = vmatpush.msra.mxu0 0.0
    %142 = vmatpush.msra.mxu0 0.0
    %143 = vmatpush.msra.mxu0 %v110
    %144 = vmatpush.msra.mxu0 %v108
    %145 = vmatpush.msra.mxu0 %v106
    %146 = vmatpush.msra.mxu0 %v104
    %147 = vmatpush.msra.mxu0 %v102
    %148 = vmatpush.msra.mxu0 %v100
    %149 = vmatpush.msra.mxu0 %v98
    %150 = vmatpush.msra.mxu0 %v96
    %151 = vmatmul.f32.gmra.mxu0 %v113
    %v152 = vpop.f32.mrf.mxu0
    %v153 = vadd.f32 0.0, %v152
    %154 = vdwg.mxu0
    %v157 = vrot.slane %v153, 6
    %vm158 = vcmask 1041408
    %v159 = vsel %vm158, %v133, %v157
    %161 = vst [vmem:[%s3] sm:$0xf] %v159
    // Predicated region
    $region18: #{autoencoder_forward.1} parent=1 // pred_check
      _
    $region19: #{autoencoder_forward.1} parent=1 // pred_check_branch
      %163 = sbr.rel (0) target = $region21
    $region20: #{autoencoder_forward.1} parent=1 // pred_region
      _
    $region21: #{autoencoder_forward.1} parent=1 // pred_fallthru
      _
    // Predicated region
    $region22: #{autoencoder_forward.1} parent=1 // pred_check
      _
    $region23: #{autoencoder_forward.1} parent=1 // pred_check_branch
      %165 = sbr.rel (0) target = $region25
    $region24: #{autoencoder_forward.1} parent=1 // pred_region
      _
    $region25: #{autoencoder_forward.1} parent=1 // pred_fallthru
      _
    %166 = vsyncpa [#allocation3], 1

</llo_original>
